<compile_context>
chip_gen: v6e
topology: v6e:2x2x1
jax: 0.10.0
libtpu: 0.0.40
codegen_flags: <defaults>
</compile_context>

<pallas_src>
import functools
import math

import jax
import jax.numpy as jnp
from jax import lax
from jax.experimental import pallas as pl
from jax.experimental.pallas import tpu as pltpu

_MIB = 1024 * 1024
_STREAM_BLOCK_BYTES = 4 * _MIB          # streaming block size (per review: 4-8 MiB)
_WIDTHS = (1024, 512, 256, 128)         # candidate lane-dense 2-D widths


# ---------------- generation-aware VMEM sizing ----------------

@functools.lru_cache(maxsize=None)
def _vmem_limit_bytes():
    """Scoped-VMEM limit derived from the chip's physical VMEM capacity."""
    try:
        cap = int(pltpu.get_tpu_info().vmem_capacity_bytes)
    except Exception:
        cap = 64 * _MIB                 # conservative fallback (v7x per-core VMEM)
    return max(32 * _MIB, (cap * 3) // 4)   # ~96 MiB on v5e/v6e, ~48 MiB on v7x


def _fused_budget_bytes():
    return _vmem_limit_bytes() - 8 * _MIB   # headroom for compiler scratch


def _sublane_rows(dtype):
    # rows per (sublane) packing unit: 8 for f32, 16 for bf16/f16.
    return max(8, 32 // jnp.dtype(dtype).itemsize)


def _padded_vmem_bytes(shape, dtype):
    """VMEM footprint of one buffer of `shape` after (sublane,128) tile padding."""
    shape = tuple(int(d) for d in shape)
    if len(shape) == 0:
        shape = (1, 1)
    elif len(shape) == 1:
        shape = (1, shape[0])
    lead = math.prod(shape[:-1])
    sub = _sublane_rows(dtype)
    rows_p = -(-lead // sub) * sub
    cols_p = -(-shape[-1] // 128) * 128
    return rows_p * cols_p * jnp.dtype(dtype).itemsize


def _fused_fits(shape, dtype):
    # input + output buffers, single-buffered (no grid => no double buffering).
    return 2 * _padded_vmem_bytes(shape, dtype) <= _fused_budget_bytes()


# ---------------- Pallas kernels ----------------

def _fused_kernel(x_ref, y_ref, max_ref, *, qp):
    """Whole tensor resident in VMEM (native shape & dtype): max + quantize."""
    xf = x_ref[...].astype(jnp.float32)
    m = jnp.max(xf)
    max_ref[0, 0] = m
    y_ref[...] = (jnp.round(xf / m * qp) / qp * m).astype(y_ref.dtype)


def _max_kernel(x_ref, pmax_ref, acc_ref, *,
                rows, block_rows, nblk, bpp, ragged, guard):
    """Streaming pass 1: per-'part' partial max (parts map to v7x TensorCores).

    Per-step work is a pure-VPU elementwise maximum into a VMEM block
    accumulator; the full cross-lane reduce and the (8,128) partial-max block
    write happen only on the last step of each part.
    """
    p = pl.program_id(0)
    i = pl.program_id(1)
    blk = p * bpp + i

    @pl.when(i == 0)
    def _():
        acc_ref[...] = jnp.full(acc_ref.shape, -jnp.inf, jnp.float32)

    def _accum():
        x = x_ref[...].astype(jnp.float32)
        if ragged:
            # Mask rows past the end of the (ragged) last block with -inf.
            row = lax.broadcasted_iota(jnp.int32, x.shape, 0) + blk * block_rows
            x = jnp.where(row < rows, x, -jnp.inf)
        acc_ref[...] = jnp.maximum(acc_ref[...], x)

    if guard:
        pl.when(blk < nblk)(_accum)   # skip the (clamped) overflow step
    else:
        _accum()

    @pl.when(i == pl.num_programs(1) - 1)
    def _():
        pmax_ref[...] = jnp.full(pmax_ref.shape, jnp.max(acc_ref[...]), jnp.float32)


def _quant_kernel(max_ref, x_ref, y_ref, *, qp):
    """Streaming pass 2: elementwise quantize with the precomputed global max."""
    m = max_ref[0, 0]
    xf = x_ref[...].astype(jnp.float32)
    y_ref[...] = (jnp.round(xf / m * qp) / qp * m).astype(y_ref.dtype)


# ---------------- pallas_call wrappers ----------------

def _minmax_quantize_fused(x, qp):
    """Single fused kernel on the native shape/dtype (no reshape, no pad)."""
    xn = x if x.ndim >= 2 else x.reshape(1, -1)
    y, m = pl.pallas_call(
        functools.partial(_fused_kernel, qp=float(qp)),
        out_shape=(jax.ShapeDtypeStruct(xn.shape, xn.dtype),
                   jax.ShapeDtypeStruct((1, 1), jnp.float32)),
        in_specs=[pl.BlockSpec(memory_space=pltpu.VMEM)],
        out_specs=(pl.BlockSpec(memory_space=pltpu.VMEM),
                   pl.BlockSpec(memory_space=pltpu.SMEM)),
        compiler_params=pltpu.CompilerParams(
            vmem_limit_bytes=_vmem_limit_bytes()),
    )(xn)
    return y.reshape(x.shape), m[0, 0]


def _minmax_quantize_streaming(x, qp):
    """Two-pass streaming path (max, then quantize) in the native dtype."""
    dtype = x.dtype
    n = x.size
    itemsize = jnp.dtype(dtype).itemsize
    sub = _sublane_rows(dtype)

    width = next((w for w in _WIDTHS if n % w == 0), None)
    pad = 0
    if width is None:
        # Rare fallback (n not a multiple of 128): pad with a max-neutral value
        # and slice the quantized tail off afterwards.
        # TODO(synk): replace with an in-kernel element-level tail mask.
        width = 128
        pad = (-n) % width
        flat = jnp.pad(x.reshape(-1), (0, pad),
                       constant_values=float(jnp.finfo(dtype).min))
    else:
        flat = x.reshape(-1)   # may relayout once; unavoidable for arbitrary shapes

    rows = (n + pad) // width
    block_rows = max(sub, (_STREAM_BLOCK_BYTES // itemsize) // width)
    block_rows = min(block_rows, -(-rows // sub) * sub)
    nblk = pl.cdiv(rows, block_rows)
    x2d = flat.reshape(rows, width)

    # v7x megacore split of the max pass; harmless (sequential) on 1-TC chips.
    nparts = 2 if nblk >= 2 else 1
    bpp = pl.cdiv(nblk, nparts)
    guard = (nparts * bpp != nblk)       # one clamped/skipped overflow step
    ragged = (rows % block_rows != 0)

    if guard:
        x_idx = lambda p, i: (jnp.minimum(p * bpp + i, nblk - 1), 0)
    else:
        x_idx = lambda p, i: (p * bpp + i, 0)

    # Pass 1: per-part partial max, one (8,128) output block per part.
    pmax = pl.pallas_call(
        functools.partial(_max_kernel, rows=rows, block_rows=block_rows,
                          nblk=nblk, bpp=bpp, ragged=ragged, guard=guard),
        out_shape=jax.ShapeDtypeStruct((nparts, 8, 128), jnp.float32),
        grid=(nparts, bpp),
        in_specs=[pl.BlockSpec((block_rows, width), x_idx)],
        out_specs=pl.BlockSpec((1, 8, 128), lambda p, i: (p, 0, 0)),
        scratch_shapes=[pltpu.VMEM((block_rows, width), jnp.float32)],
        compiler_params=pltpu.CompilerParams(
            dimension_semantics=("parallel", "arbitrary"),
            vmem_limit_bytes=_vmem_limit_bytes()),
    )(x2d)

    x_max = jnp.max(pmax)                # combine the per-core partial maxes

    # Pass 2: elementwise quantize ("parallel" => megacore-sharded on v7x).
    y2d = pl.pallas_call(
        functools.partial(_quant_kernel, qp=float(qp)),
        out_shape=jax.ShapeDtypeStruct((rows, width), dtype),
        grid=(nblk,),
        in_specs=[
            pl.BlockSpec(memory_space=pltpu.SMEM),                 # x_max scalar
            pl.BlockSpec((block_rows, width), lambda i: (i, 0)),   # x tile
        ],
        out_specs=pl.BlockSpec((block_rows, width), lambda i: (i, 0)),
        compiler_params=pltpu.CompilerParams(
            dimension_semantics=("parallel",),
            vmem_limit_bytes=_vmem_limit_bytes()),
    )(x_max.reshape(1, 1), x2d)

    y_flat = y2d.reshape(-1)
    if pad > 0:
        y_flat = y_flat[:n]
    return y_flat.reshape(x.shape), x_max


def minmax_quantize(x, qp):
    """Full forward of _MinMaxFixed_quantizer on an arbitrary-shaped float array."""
    assert jnp.issubdtype(x.dtype, jnp.floating), "expects a floating-point tensor"
    if _fused_fits(x.shape, x.dtype):
        y, x_max = _minmax_quantize_fused(x, qp)
    else:
        y, x_max = _minmax_quantize_streaming(x, qp)
    return y, x_max.astype(x.dtype)


# ---------------- module-level wrapper mirroring MinMax_quantizer ----------------

class MinMaxQuantizerPallas:
    """JAX/Pallas port of MinMax_quantizer. 'module' is a plain attribute bag."""

    def __init__(self, module, num_bits, mode, **kwargs):
        self.params_set(module, num_bits, mode)
        self.w_min = None
        self.w_max = None

    def params_set(self, module, num_bits, mode):
        if mode == 'activation':
            if module.first_layer:
                module.x_Qn = 2 ** (num_bits - 1) - 1
                module.x_Qp = 2 ** (num_bits - 1) - 1
                self.is_weight = True
            else:
                module.x_Qn = 0
                module.x_Qp = 2 ** num_bits - 1
                self.is_weight = False
        elif mode == 'weight':
            module.w_Qn = 2 ** (num_bits - 1) - 1
            module.w_Qp = 2 ** (num_bits - 1) - 1
            self.is_weight = True

    def forward(self, x, Qparms, Qn, Qp, num_elements, grad_scale_mode):
        # Qn is unused in the reference forward (only Qp matters).
        y, x_max = minmax_quantize(x, Qp)
        if self.is_weight:
            self.w_min = -x_max
            self.w_max = x_max
        return y

    def calculate_min_max(self, *args):
        return (self.w_min, self.w_max)


# ---------------- demo / self-check ----------------

if __name__ == "__main__":
    class _DummyModule:
        first_layer = False

    num_bits = 8
    mod = _DummyModule()
    quant = MinMaxQuantizerPallas(mod, num_bits=num_bits, mode='weight')
    Qn, Qp = mod.w_Qn, mod.w_Qp

    # --- 1) small f32 NCHW weight-like tensor (fused, native-shape path) ---
    key = jax.random.PRNGKey(0)
    x = jax.random.normal(key, (2, 4, 16, 16), dtype=jnp.float32)
    y = quant.forward(x, Qparms=None, Qn=Qn, Qp=Qp,
                      num_elements=x.size, grad_scale_mode=None)
    y = jax.block_until_ready(y)

    x_max_ref = jnp.max(x)
    y_ref = jnp.round(x / x_max_ref * Qp) / Qp * x_max_ref
    assert y.shape == x.shape and y.dtype == x.dtype
    assert jnp.allclose(y, y_ref, atol=1e-5, rtol=1e-5)
    w_min, w_max = quant.calculate_min_max()
    assert jnp.allclose(w_max, x_max_ref) and jnp.allclose(w_min, -x_max_ref)

    # --- 2) bf16 fused path (native-dtype I/O, no f32 HBM round-trips) ---
    xb = jax.random.normal(jax.random.PRNGKey(1), (4, 4, 32, 32),
                           dtype=jnp.float32).astype(jnp.bfloat16)
    yb, mb = minmax_quantize(xb, Qp)
    yb = jax.block_until_ready(yb)
    xbf = xb.astype(jnp.float32)
    mb_ref = jnp.max(xbf)
    yb_ref = (jnp.round(xbf / mb_ref * Qp) / Qp * mb_ref).astype(jnp.bfloat16)
    assert yb.dtype == jnp.bfloat16
    assert jnp.allclose(mb.astype(jnp.float32), mb_ref, atol=1e-6, rtol=1e-6)
    assert jnp.allclose(yb.astype(jnp.float32), yb_ref.astype(jnp.float32),
                        atol=2e-2, rtol=2e-2)

    # --- 3) f32 streaming path: ragged last block, clamped parallel split ---
    x_big = jax.random.normal(jax.random.PRNGKey(2), (2500, 1024), dtype=jnp.float32)
    y_big, m_big = _minmax_quantize_streaming(x_big, float(Qp))
    y_big = jax.block_until_ready(y_big)
    m_big_ref = jnp.max(x_big)
    y_big_ref = jnp.round(x_big / m_big_ref * Qp) / Qp * m_big_ref
    assert jnp.allclose(m_big, m_big_ref)
    assert jnp.allclose(y_big, y_big_ref, atol=1e-5, rtol=1e-5)

    # --- 4) bf16 streaming path (native-dtype HBM traffic, ragged rows) ---
    x_bs = jax.random.normal(jax.random.PRNGKey(3), (2500, 1024),
                             dtype=jnp.float32).astype(jnp.bfloat16)
    y_bs, m_bs = _minmax_quantize_streaming(x_bs, float(Qp))
    y_bs = jax.block_until_ready(y_bs)
    xbsf = x_bs.astype(jnp.float32)
    m_bs_ref = jnp.max(xbsf)
    y_bs_ref = (jnp.round(xbsf / m_bs_ref * Qp) / Qp * m_bs_ref).astype(jnp.bfloat16)
    assert y_bs.dtype == jnp.bfloat16
    assert jnp.allclose(m_bs, m_bs_ref)
    assert jnp.allclose(y_bs.astype(jnp.float32), y_bs_ref.astype(jnp.float32),
                        atol=2e-2, rtol=2e-2)

    print("KERNEL_OK")
</pallas_src>

<mosaic_0001>
module attributes {stable_mosaic.version = 11 : i64} {
  func.func @_fused_kernel(%arg0: memref<2x4x16x16xf32, #tpu.memory_space<vmem>>, %arg1: memref<2x4x16x16xf32, #tpu.memory_space<vmem>>, %arg2: memref<1x1xf32, #tpu.memory_space<smem>>) attributes {dimension_semantics = [], scalar_prefetch = 0 : i64, scratch_operands = 0 : i64, tpu.core_type = #tpu.core_type<tc>} {
    %c0 = arith.constant 0 : index
    %c0_0 = arith.constant 0 : index
    %c0_1 = arith.constant 0 : index
    %c0_2 = arith.constant 0 : index
    %0 = vector.load %arg0[%c0, %c0_0, %c0_1, %c0_2] : memref<2x4x16x16xf32, #tpu.memory_space<vmem>>, vector<2x4x16x16xf32>
    %1 = vector.shape_cast %0 : vector<2x4x16x16xf32> to vector<1x2x4x16x16xf32>
    %cst = arith.constant dense<0xFF800000> : vector<1xf32>
    %2 = vector.multi_reduction <maximumf>, %1, %cst [1, 2, 3, 4] : vector<1x2x4x16x16xf32> to vector<1xf32>
    %3 = vector.shape_cast %2 : vector<1xf32> to vector<1x1x1x1x1xf32>
    %4 = vector.extract %3[0, 0, 0, 0, 0] : f32 from vector<1x1x1x1x1xf32>
    %c0_3 = arith.constant 0 : index
    %c0_4 = arith.constant 0 : index
    %5 = memref.load %arg2[%c0_3, %c0_4] : memref<1x1xf32, #tpu.memory_space<smem>>
    memref.store %4, %arg2[%c0_3, %c0_4] : memref<1x1xf32, #tpu.memory_space<smem>>
    %6 = vector.broadcast %4 : f32 to vector<2x4x16x16xf32>
    %7 = arith.divf %0, %6 : vector<2x4x16x16xf32>
    %cst_5 = arith.constant 1.270000e+02 : f32
    %8 = vector.broadcast %cst_5 : f32 to vector<2x4x16x16xf32>
    %9 = arith.mulf %7, %8 : vector<2x4x16x16xf32>
    %10 = math.roundeven %9 : vector<2x4x16x16xf32>
    %cst_6 = arith.constant 1.270000e+02 : f32
    %11 = vector.broadcast %cst_6 : f32 to vector<2x4x16x16xf32>
    %12 = arith.divf %10, %11 : vector<2x4x16x16xf32>
    %13 = vector.broadcast %4 : f32 to vector<2x4x16x16xf32>
    %14 = arith.mulf %12, %13 : vector<2x4x16x16xf32>
    %c0_7 = arith.constant 0 : index
    %c0_8 = arith.constant 0 : index
    %c0_9 = arith.constant 0 : index
    %c0_10 = arith.constant 0 : index
    %15 = vector.load %arg1[%c0_7, %c0_8, %c0_9, %c0_10] : memref<2x4x16x16xf32, #tpu.memory_space<vmem>>, vector<2x4x16x16xf32>
    tpu.vector_store %arg1[%c0_7, %c0_8, %c0_9, %c0_10], %14 {strides = array<i32>} : memref<2x4x16x16xf32, #tpu.memory_space<vmem>>, vector<2x4x16x16xf32>,
    return
  }
}

</mosaic_0001>

<llo_original>
// kernel: tpu_custom_call.1
$region0: #{tpu_custom_call.1}
  #allocation0 [shape = 'u32[]', space=smem, size = 0x4, offset = 0x4, fixed_abs, tag = 'smem constant byte address 0x4 - core index']
  #allocation1 [shape = 'u32[144,128]{1,0:T(1,128)}', space=vmem, size = 0x12000, scoped, tag = 'internal scratch']
  %s0 = inlined_call_operand.hbm [shape: f32[2,4,16,16], index: 0, kind: input, shape index: {}]
  %s1 = inlined_call_operand.hbm [shape: f32[2,4,16,16], index: 1, kind: output, shape index: {0}]
  %s2 = inlined_call_operand.hbm [shape: f32[1,1], index: 2, kind: output, shape index: {1}]
  %3 = xla_tuple %s1, %s2
  %s4 = sld [smem:[#allocation0]]
  $region26: #{tpu_custom_call.1} parent=0
    _
  %s6 = ssub.s32 1, %s4
  %s7 = scalar_select 0, %s6, %s4
  $region1: #{tpu_custom_call.1} parent=0
    #allocation2 [shape = 'u8[65536]{0}', space=vmem, size = 0x10000, scoped, tag = 'input window, operand 0, single buffered']
    #allocation3 [shape = 's32[1]{0}', space=sflag, size = 0x4, scoped, tag = 'scoped memory for tpu_custom_call.1']
    #allocation4 [shape = 's32[1]{0}', space=sflag, size = 0x4, scoped, tag = 'scoped memory for tpu_custom_call.1']
    #allocation5 [shape = 's32[1]{0}', space=sflag, size = 0x4, scoped, tag = 'scoped memory for tpu_custom_call.1']
    #allocation6 [shape = 'u8[65536]{0}', space=vmem, size = 0x10000, scoped, tag = 'output window, operand 0, single buffered']
    #allocation7 [shape = 'u8[512]{0}', space=smem, size = 0x200, scoped, tag = 'output window, operand 1, single buffered']
    %8 = vsyncpa [#allocation3], 0
    %9 = vsyncpa [#allocation4], 0
    %10 = vsyncpa [#allocation5], 0
    // Predicated region
    $region2: #{tpu_custom_call.1} parent=1 // pred_check
      _
    $region3: #{tpu_custom_call.1} parent=1 // pred_check_branch
      %12 = sbr.rel (0) target = $region5
    $region4: #{tpu_custom_call.1} parent=1 // pred_region
      %s14 = ssub.s32 2048, 2048
      %15 = vsyncadd [#allocation3], %s14
      %s16 = sshll.u32 [#allocation2], 4
      %s17 = int_to_ptr.vmem [resolvable:$true] %s16
      %22 = dma.hbm_to_vmem [thread:$0]  %s0, 2048, %s17, [#allocation3], 128, 128, 8
    $region5: #{tpu_custom_call.1} parent=1 // pred_fallthru
      _
    // Predicated region
    $region6: #{tpu_custom_call.1} parent=1 // pred_check
      _
    $region7: #{tpu_custom_call.1} parent=1 // pred_check_branch
      %24 = sbr.rel (0) target = $region9
    $region8: #{tpu_custom_call.1} parent=1 // pred_region
      %25 = dma.done [#allocation3], 2048
    $region9: #{tpu_custom_call.1} parent=1 // pred_fallthru
      _
    %v26 = vld [vmem:[#allocation2] sm:$0xff]
    %v27 = vld [vmem:[#allocation2 + $0x8] sm:$0xff]
    %v28 = vld [vmem:[#allocation2 + $0x10] sm:$0xff]
    %v29 = vld [vmem:[#allocation2 + $0x18] sm:$0xff]
    %v30 = vld [vmem:[#allocation2 + $0x20] sm:$0xff]
    %v31 = vld [vmem:[#allocation2 + $0x28] sm:$0xff]
    %v32 = vld [vmem:[#allocation2 + $0x30] sm:$0xff]
    %v33 = vld [vmem:[#allocation2 + $0x38] sm:$0xff]
    %v34 = vld [vmem:[#allocation2 + $0x40] sm:$0xff]
    %v35 = vld [vmem:[#allocation2 + $0x48] sm:$0xff]
    %v36 = vld [vmem:[#allocation2 + $0x50] sm:$0xff]
    %v37 = vld [vmem:[#allocation2 + $0x58] sm:$0xff]
    %v38 = vld [vmem:[#allocation2 + $0x60] sm:$0xff]
    %v39 = vld [vmem:[#allocation2 + $0x68] sm:$0xff]
    %v40 = vld [vmem:[#allocation2 + $0x70] sm:$0xff]
    %v41 = vld [vmem:[#allocation2 + $0x78] sm:$0xff]
    %vm42 = vcmask 130048
    %v43 = vsel %vm42, %v26, -inf
    %v44 = vsel %vm42, %v27, -inf
    %v45 = vsel %vm42, %v28, -inf
    %v46 = vsel %vm42, %v29, -inf
    %v47 = vsel %vm42, %v30, -inf
    %v48 = vmax.f32 %v43, %v47
    %v49 = vsel %vm42, %v31, -inf
    %v50 = vmax.f32 %v44, %v49
    %v51 = vsel %vm42, %v32, -inf
    %v52 = vmax.f32 %v45, %v51
    %v53 = vsel %vm42, %v33, -inf
    %v54 = vmax.f32 %v46, %v53
    %v55 = vsel %vm42, %v34, -inf
    %v56 = vmax.f32 %v48, %v55
    %v57 = vsel %vm42, %v35, -inf
    %v58 = vmax.f32 %v50, %v57
    %v59 = vsel %vm42, %v36, -inf
    %v60 = vmax.f32 %v52, %v59
    %v61 = vsel %vm42, %v37, -inf
    %v62 = vmax.f32 %v54, %v61
    %v63 = vsel %vm42, %v38, -inf
    %v64 = vmax.f32 %v56, %v63
    %v65 = vsel %vm42, %v39, -inf
    %v66 = vmax.f32 %v58, %v65
    %v67 = vsel %vm42, %v40, -inf
    %v68 = vmax.f32 %v60, %v67
    %v69 = vsel %vm42, %v41, -inf
    %v70 = vmax.f32 %v62, %v69
    %v71 = vmax.f32 %v64, %v66
    %v72 = vmax.f32 %v68, %v70
    %v73 = vmax.f32 %v71, %v72
    %74 = vmax.xlane.f32.xlu0 %v73
    %v75 = vpop.xlane.xlu0 %74
    %v76 = vrot.slane %v75, 4
    %v77 = vmax.f32 %v75, %v76
    %v78 = vrot.slane %v77, 2
    %v79 = vmax.f32 %v77, %v78
    %v80 = vrot.slane %v79, 1
    %v81 = vmax.f32 %v79, %v80
    %s82 = vtos %v81
    %s83 = scalar_lea.smem [#allocation7], 0
    %84 = sst [smem:[%s83]] %s82
    %v85 = vstv %s82
    %v86 = vrcp.pop %v85
    %v87 = vmul.f32 %v26, %v86
    %v88 = vmul.f32 %v27, %v86
    %v89 = vmul.f32 %v28, %v86
    %v90 = vmul.f32 %v29, %v86
    %v91 = vmul.f32 %v30, %v86
    %v92 = vmul.f32 %v31, %v86
    %v93 = vmul.f32 %v32, %v86
    %v94 = vmul.f32 %v33, %v86
    %v95 = vmul.f32 %v34, %v86
    %v96 = vmul.f32 %v35, %v86
    %v97 = vmul.f32 %v36, %v86
    %v98 = vmul.f32 %v37, %v86
    %v99 = vmul.f32 %v38, %v86
    %v100 = vmul.f32 %v39, %v86
    %v101 = vmul.f32 %v40, %v86
    %v102 = vmul.f32 %v41, %v86
    %v103 = vmul.f32 %v87, 127.0
    %v104 = vmul.f32 %v88, 127.0
    %v105 = vmul.f32 %v89, 127.0
    %v106 = vmul.f32 %v90, 127.0
    %v107 = vmul.f32 %v91, 127.0
    %v108 = vmul.f32 %v92, 127.0
    %v109 = vmul.f32 %v93, 127.0
    %v110 = vmul.f32 %v94, 127.0
    %v111 = vmul.f32 %v95, 127.0
    %v112 = vmul.f32 %v96, 127.0
    %v113 = vmul.f32 %v97, 127.0
    %v114 = vmul.f32 %v98, 127.0
    %v115 = vmul.f32 %v99, 127.0
    %v116 = vmul.f32 %v100, 127.0
    %v117 = vmul.f32 %v101, 127.0
    %v118 = vmul.f32 %v102, 127.0
    %v119 = vround.ne.pseudo %v103
    %v120 = vround.ne.pseudo %v104
    %v121 = vround.ne.pseudo %v105
    %v122 = vround.ne.pseudo %v106
    %v123 = vround.ne.pseudo %v107
    %v124 = vround.ne.pseudo %v108
    %v125 = vround.ne.pseudo %v109
    %v126 = vround.ne.pseudo %v110
    %v127 = vround.ne.pseudo %v111
    %v128 = vround.ne.pseudo %v112
    %v129 = vround.ne.pseudo %v113
    %v130 = vround.ne.pseudo %v114
    %v131 = vround.ne.pseudo %v115
    %v132 = vround.ne.pseudo %v116
    %v133 = vround.ne.pseudo %v117
    %v134 = vround.ne.pseudo %v118
    %v135 = vrcp.pop 127.0
    %v136 = vmul.f32 %v119, %v135
    %v137 = vmul.f32 %v120, %v135
    %v138 = vmul.f32 %v121, %v135
    %v139 = vmul.f32 %v122, %v135
    %v140 = vmul.f32 %v123, %v135
    %v141 = vmul.f32 %v124, %v135
    %v142 = vmul.f32 %v125, %v135
    %v143 = vmul.f32 %v126, %v135
    %v144 = vmul.f32 %v127, %v135
    %v145 = vmul.f32 %v128, %v135
    %v146 = vmul.f32 %v129, %v135
    %v147 = vmul.f32 %v130, %v135
    %v148 = vmul.f32 %v131, %v135
    %v149 = vmul.f32 %v132, %v135
    %v150 = vmul.f32 %v133, %v135
    %v151 = vmul.f32 %v134, %v135
    %v152 = vmul.f32 %v136, %v85
    %v153 = vmul.f32 %v137, %v85
    %v154 = vmul.f32 %v138, %v85
    %v155 = vmul.f32 %v139, %v85
    %v156 = vmul.f32 %v140, %v85
    %v157 = vmul.f32 %v141, %v85
    %v158 = vmul.f32 %v142, %v85
    %v159 = vmul.f32 %v143, %v85
    %v160 = vmul.f32 %v144, %v85
    %v161 = vmul.f32 %v145, %v85
    %v162 = vmul.f32 %v146, %v85
    %v163 = vmul.f32 %v147, %v85
    %v164 = vmul.f32 %v148, %v85
    %v165 = vmul.f32 %v149, %v85
    %v166 = vmul.f32 %v150, %v85
    %v167 = vmul.f32 %v151, %v85
    %168 = vst.msk [vmem:[#allocation6] sm:$0xff] %vm42, %v152
    %169 = vst.msk [vmem:[#allocation6 + $0x8] sm:$0xff] %vm42, %v153
    %170 = vst.msk [vmem:[#allocation6 + $0x10] sm:$0xff] %vm42, %v154
    %171 = vst.msk [vmem:[#allocation6 + $0x18] sm:$0xff] %vm42, %v155
    %172 = vst.msk [vmem:[#allocation6 + $0x20] sm:$0xff] %vm42, %v156
    %173 = vst.msk [vmem:[#allocation6 + $0x28] sm:$0xff] %vm42, %v157
    %174 = vst.msk [vmem:[#allocation6 + $0x30] sm:$0xff] %vm42, %v158
    %175 = vst.msk [vmem:[#allocation6 + $0x38] sm:$0xff] %vm42, %v159
    %176 = vst.msk [vmem:[#allocation6 + $0x40] sm:$0xff] %vm42, %v160
    %177 = vst.msk [vmem:[#allocation6 + $0x48] sm:$0xff] %vm42, %v161
    %178 = vst.msk [vmem:[#allocation6 + $0x50] sm:$0xff] %vm42, %v162
    %179 = vst.msk [vmem:[#allocation6 + $0x58] sm:$0xff] %vm42, %v163
    %180 = vst.msk [vmem:[#allocation6 + $0x60] sm:$0xff] %vm42, %v164
    %181 = vst.msk [vmem:[#allocation6 + $0x68] sm:$0xff] %vm42, %v165
    %182 = vst.msk [vmem:[#allocation6 + $0x70] sm:$0xff] %vm42, %v166
    %183 = vst.msk [vmem:[#allocation6 + $0x78] sm:$0xff] %vm42, %v167
    // Predicated region
    $region10: #{tpu_custom_call.1} parent=1 // pred_check
      _
    $region11: #{tpu_custom_call.1} parent=1 // pred_check_branch
      %185 = sbr.rel (0) target = $region13
    $region12: #{tpu_custom_call.1} parent=1 // pred_region
      %s187 = ssub.s32 2048, 2048
      %188 = vsyncadd [#allocation4], %s187
      %s189 = sshll.u32 [#allocation6], 4
      %s190 = int_to_ptr.vmem [resolvable:$true] %s189
      %195 = dma.vmem_to_hbm [thread:$0]  %s190, 2048, %s1, [#allocation4], 128, 128, 8
    $region13: #{tpu_custom_call.1} parent=1 // pred_fallthru
      _
    // Predicated region
    $region14: #{tpu_custom_call.1} parent=1 // pred_check
      _
    $region15: #{tpu_custom_call.1} parent=1 // pred_check_branch
      %197 = sbr.rel (0) target = $region17
    $region16: #{tpu_custom_call.1} parent=1 // pred_region
      %s199 = ssub.s32 16, 16
      %200 = vsyncadd [#allocation5], %s199
      %203 = dma.smem_to_hbm [#allocation7], 16, %s2, [#allocation5]
    $region17: #{tpu_custom_call.1} parent=1 // pred_fallthru
      _
    // Predicated region
    $region18: #{tpu_custom_call.1} parent=1 // pred_check
      _
    $region19: #{tpu_custom_call.1} parent=1 // pred_check_branch
      %205 = sbr.rel (0) target = $region21
    $region20: #{tpu_custom_call.1} parent=1 // pred_region
      %206 = dma.done [#allocation4], 2048
    $region21: #{tpu_custom_call.1} parent=1 // pred_fallthru
      _
    // Predicated region
    $region22: #{tpu_custom_call.1} parent=1 // pred_check
      _
    $region23: #{tpu_custom_call.1} parent=1 // pred_check_branch
      %208 = sbr.rel (0) target = $region25
    $region24: #{tpu_custom_call.1} parent=1 // pred_region
      %209 = dma.done [#allocation5], 16
    $region25: #{tpu_custom_call.1} parent=1 // pred_fallthru
      _
    %210 = sfence
    %211 = vsyncpa [#allocation3], 1
    %212 = vsyncpa [#allocation4], 1
    %213 = vsyncpa [#allocation5], 1

</llo_original>
